<compile_context>
chip_gen: v7x
topology: tpu7x:2x2x1
jax: 0.10.0
libtpu: 0.0.40
codegen_flags: <defaults>
</compile_context>

<pallas_src>
import functools

import jax
import jax.numpy as jnp
from jax.experimental import pallas as pl
from jax.experimental.pallas import tpu as pltpu


def _mlp_kernel(x_ref, w1t_ref, b1_ref, w2t_ref, b2_ref, o_ref):
    # x_ref:   (C, T)        — one HW tile of one batch, lanes = pixels
    # w1t_ref: (hidden, C)   b1_ref: (hidden, 1)
    # w2t_ref: (cout, hidden) b2_ref: (cout, 1)
    # o_ref:   (cout, T)
    x = x_ref[...]
    h = jnp.dot(w1t_ref[...], x, preferred_element_type=jnp.float32)
    h = jnp.maximum(h + b1_ref[...], 0.0)          # bias broadcast across lanes, ReLU
    # h stays f32 (weights are f32) — no silent downcast of the accumulator.
    o = jnp.dot(w2t_ref[...], h, preferred_element_type=jnp.float32)
    o_ref[...] = (o + b2_ref[...]).astype(o_ref.dtype)


@functools.partial(jax.jit, static_argnames=("tile_hw",))
def input_mlp_forward(x, w1, b1, w2, b2, *, tile_hw=8192):
    """x: (B, C, H, W) float32; returns (B, out_channels, H, W).

    w1: (C, hidden), b1: (hidden,), w2: (hidden, cout), b2: (cout,)
    """
    B, C, H, W = x.shape
    hidden = w1.shape[1]
    cout = w2.shape[1]
    hw = H * W

    # Lane-tile size: full extent if small, otherwise a multiple of 128.
    t = min(tile_hw, hw)
    if t != hw:
        t = max((t // 128) * 128, 128)

    # NCHW -> (B, C, H*W): a pure reshape on contiguous memory (no transpose,
    # no extra HBM pass).
    xr = x.reshape(B, C, hw)

    # One-time, tiny weight/bias re-layout (hidden<=32, cout<=14 elements wide).
    w1t = jnp.transpose(w1)          # (hidden, C)
    w2t = jnp.transpose(w2)          # (cout, hidden)
    b1c = b1.reshape(hidden, 1)
    b2c = b2.reshape(cout, 1)

    grid = (B, pl.cdiv(hw, t))

    out = pl.pallas_call(
        _mlp_kernel,
        out_shape=jax.ShapeDtypeStruct((B, cout, hw), x.dtype),
        grid_spec=pltpu.PrefetchScalarGridSpec(
            num_scalar_prefetch=0,
            grid=grid,
            in_specs=[
                # x: squeeze batch dim; kernel sees (C, T) with lane-dense T.
                pl.BlockSpec((None, C, t), lambda b, j: (b, 0, j)),
                # Weights / biases: full, constant index_map (hoisted, no re-DMA).
                pl.BlockSpec((hidden, C), lambda b, j: (0, 0)),
                pl.BlockSpec((hidden, 1), lambda b, j: (0, 0)),
                pl.BlockSpec((cout, hidden), lambda b, j: (0, 0)),
                pl.BlockSpec((cout, 1), lambda b, j: (0, 0)),
            ],
            out_specs=pl.BlockSpec((None, cout, t), lambda b, j: (b, 0, j)),
        ),
        compiler_params=pltpu.CompilerParams(
            # Both axes independent: shards across v7x's 2 TensorCores.
            dimension_semantics=("parallel", "parallel"),
            # Tiny footprint; stay well under v7x's 64 MiB physical VMEM.
            vmem_limit_bytes=32 * 1024 * 1024,
        ),
    )(xr, w1t, b1c, w2t, b2c)

    # (B, cout, H*W) -> (B, cout, H, W): free reshape, no transpose needed.
    return out.reshape(B, cout, H, W)


def init_params(key, in_channels=16, hidden_dim=32, out_channels=14,
                dtype=jnp.float32):
    """Deterministic init matching nn.Linear shapes (uniform ~ PyTorch default)."""
    k1, k2, k3, k4 = jax.random.split(key, 4)
    lim1 = 1.0 / (in_channels ** 0.5)
    lim2 = 1.0 / (hidden_dim ** 0.5)
    w1 = jax.random.uniform(k1, (in_channels, hidden_dim), dtype,
                            minval=-lim1, maxval=lim1)
    b1 = jax.random.uniform(k2, (hidden_dim,), dtype, minval=-lim1, maxval=lim1)
    w2 = jax.random.uniform(k3, (hidden_dim, out_channels), dtype,
                            minval=-lim2, maxval=lim2)
    b2 = jax.random.uniform(k4, (out_channels,), dtype,
                            minval=-lim2, maxval=lim2)
    return w1, b1, w2, b2


def _reference(x, w1, b1, w2, b2):
    xr = jnp.transpose(x, (0, 2, 3, 1))
    h = jnp.maximum(xr @ w1 + b1, 0.0)
    o = h @ w2 + b2
    return jnp.transpose(o, (0, 3, 1, 2))


if __name__ == "__main__":
    key = jax.random.PRNGKey(0)
    kx, kp = jax.random.split(key)

    B, C, H, W = 2, 16, 16, 16          # in_channels = 16 per module default
    x = jax.random.normal(kx, (B, C, H, W), dtype=jnp.float32)

    w1, b1, w2, b2 = init_params(kp, in_channels=C, hidden_dim=32,
                                 out_channels=14)

    out = input_mlp_forward(x, w1, b1, w2, b2)
    out = jax.block_until_ready(out)

    ref = _reference(x, w1, b1, w2, b2)
    assert out.shape == (B, 14, H, W), out.shape
    assert jnp.allclose(out, ref, atol=1e-4, rtol=1e-5), "mismatch vs reference"

    print("KERNEL_OK")
</pallas_src>

<mosaic_0001>
module attributes {stable_mosaic.version = 11 : i64} {
  func.func @_mlp_kernel(%arg0: i32, %arg1: i32, %arg2: memref<1x16x256xf32, #tpu.memory_space<vmem>>, %arg3: memref<32x16xf32, #tpu.memory_space<vmem>>, %arg4: memref<32x1xf32, #tpu.memory_space<vmem>>, %arg5: memref<14x32xf32, #tpu.memory_space<vmem>>, %arg6: memref<14x1xf32, #tpu.memory_space<vmem>>, %arg7: memref<1x14x256xf32, #tpu.memory_space<vmem>>) attributes {dimension_semantics = [#tpu.dimension_semantics<parallel>, #tpu.dimension_semantics<parallel>], iteration_bounds = array<i64: 2, 1>, scalar_prefetch = 0 : i64, scratch_operands = 0 : i64, tpu.core_type = #tpu.core_type<tc>, window_params = [{transform_indices = @transform_0, window_bounds = array<i64: 1, 16, 256>}, {pipeline_mode = #tpu.pipeline_mode<synchronous>, transform_indices = @transform_1, window_bounds = array<i64: 32, 16>}, {pipeline_mode = #tpu.pipeline_mode<synchronous>, transform_indices = @transform_2, window_bounds = array<i64: 32, 1>}, {pipeline_mode = #tpu.pipeline_mode<synchronous>, transform_indices = @transform_3, window_bounds = array<i64: 14, 32>}, {pipeline_mode = #tpu.pipeline_mode<synchronous>, transform_indices = @transform_4, window_bounds = array<i64: 14, 1>}, {transform_indices = @transform_5, window_bounds = array<i64: 1, 14, 256>}]} {
    %c0 = arith.constant 0 : index
    %c0_0 = arith.constant 0 : index
    %c0_1 = arith.constant 0 : index
    %0 = vector.load %arg2[%c0, %c0_0, %c0_1] : memref<1x16x256xf32, #tpu.memory_space<vmem>>, vector<1x16x256xf32>
    %1 = vector.shape_cast %0 : vector<1x16x256xf32> to vector<16x256xf32>
    %c0_2 = arith.constant 0 : index
    %c0_3 = arith.constant 0 : index
    %2 = vector.load %arg3[%c0_2, %c0_3] : memref<32x16xf32, #tpu.memory_space<vmem>>, vector<32x16xf32>
    %cst = arith.constant dense<0.000000e+00> : vector<32x256xf32>
    %3 = tpu.matmul %2, %1, %cst {dimension_numbers = #tpu.dot_dimension_numbers<[1], [0], [0], [1], [0, 0, 1, 1], [], []>} : vector<32x16xf32>, vector<16x256xf32>, vector<32x256xf32> -> vector<32x256xf32>
    %c0_4 = arith.constant 0 : index
    %c0_5 = arith.constant 0 : index
    %4 = vector.load %arg4[%c0_4, %c0_5] : memref<32x1xf32, #tpu.memory_space<vmem>>, vector<32x1xf32>
    %5 = vector.broadcast %4 : vector<32x1xf32> to vector<32x256xf32>
    %6 = arith.addf %3, %5 : vector<32x256xf32>
    %cst_6 = arith.constant 0.000000e+00 : f32
    %7 = vector.broadcast %cst_6 : f32 to vector<32x256xf32>
    %8 = arith.maximumf %6, %7 : vector<32x256xf32>
    %c0_7 = arith.constant 0 : index
    %c0_8 = arith.constant 0 : index
    %9 = vector.load %arg5[%c0_7, %c0_8] : memref<14x32xf32, #tpu.memory_space<vmem>>, vector<14x32xf32>
    %cst_9 = arith.constant dense<0.000000e+00> : vector<14x256xf32>
    %10 = tpu.matmul %9, %8, %cst_9 {dimension_numbers = #tpu.dot_dimension_numbers<[1], [0], [0], [1], [0, 0, 1, 1], [], []>} : vector<14x32xf32>, vector<32x256xf32>, vector<14x256xf32> -> vector<14x256xf32>
    %c0_10 = arith.constant 0 : index
    %c0_11 = arith.constant 0 : index
    %11 = vector.load %arg6[%c0_10, %c0_11] : memref<14x1xf32, #tpu.memory_space<vmem>>, vector<14x1xf32>
    %12 = vector.broadcast %11 : vector<14x1xf32> to vector<14x256xf32>
    %13 = arith.addf %10, %12 : vector<14x256xf32>
    %c0_12 = arith.constant 0 : index
    %c0_13 = arith.constant 0 : index
    %c0_14 = arith.constant 0 : index
    %14 = vector.load %arg7[%c0_12, %c0_13, %c0_14] : memref<1x14x256xf32, #tpu.memory_space<vmem>>, vector<1x14x256xf32>
    %15 = vector.shape_cast %14 : vector<1x14x256xf32> to vector<14x256xf32>
    %16 = vector.shape_cast %13 : vector<14x256xf32> to vector<1x14x256xf32>
    tpu.vector_store %arg7[%c0_12, %c0_13, %c0_14], %16 {strides = array<i32>} : memref<1x14x256xf32, #tpu.memory_space<vmem>>, vector<1x14x256xf32>,
    return
  }
  func.func @transform_0(%arg0: i32, %arg1: i32) -> (i32, i32, i32) {
    %c0_i32 = arith.constant 0 : i32
    %c0_i32_0 = arith.constant 0 : i32
    return %arg0, %c0_i32, %arg1 : i32, i32, i32
  }
  func.func @transform_1(%arg0: i32, %arg1: i32) -> (i32, i32) {
    %c0_i32 = arith.constant 0 : i32
    %c0_i32_0 = arith.constant 0 : i32
    %c0_i32_1 = arith.constant 0 : i32
    return %c0_i32, %c0_i32_0 : i32, i32
  }
  func.func @transform_2(%arg0: i32, %arg1: i32) -> (i32, i32) {
    %c0_i32 = arith.constant 0 : i32
    %c0_i32_0 = arith.constant 0 : i32
    %c0_i32_1 = arith.constant 0 : i32
    return %c0_i32, %c0_i32_0 : i32, i32
  }
  func.func @transform_3(%arg0: i32, %arg1: i32) -> (i32, i32) {
    %c0_i32 = arith.constant 0 : i32
    %c0_i32_0 = arith.constant 0 : i32
    %c0_i32_1 = arith.constant 0 : i32
    return %c0_i32, %c0_i32_0 : i32, i32
  }
  func.func @transform_4(%arg0: i32, %arg1: i32) -> (i32, i32) {
    %c0_i32 = arith.constant 0 : i32
    %c0_i32_0 = arith.constant 0 : i32
    %c0_i32_1 = arith.constant 0 : i32
    return %c0_i32, %c0_i32_0 : i32, i32
  }
  func.func @transform_5(%arg0: i32, %arg1: i32) -> (i32, i32, i32) {
    %c0_i32 = arith.constant 0 : i32
    %c0_i32_0 = arith.constant 0 : i32
    return %arg0, %c0_i32, %arg1 : i32, i32, i32
  }
}

</mosaic_0001>

<llo_original>
// kernel: input_mlp_forward.1
$region0: #{input_mlp_forward.1}
  #allocation0 [shape = 'u32[]', space=smem, size = 0x4, offset = 0x4, fixed_abs, tag = 'smem constant byte address 0x4 - core index']
  #allocation1 [shape = 'u32[144,128]{1,0:T(1,128)}', space=vmem, size = 0x12000, scoped, tag = 'internal scratch']
  %s0 = inlined_call_operand.vmem [shape: f32[2,16,256], index: 0, kind: input, shape index: {}]
  %s1 = inlined_call_operand.vmem [shape: f32[32,16], index: 1, kind: input, shape index: {}]
  %s2 = inlined_call_operand.vmem [shape: f32[32,1], index: 2, kind: input, shape index: {}]
  %s3 = inlined_call_operand.vmem [shape: f32[14,32], index: 3, kind: input, shape index: {}]
  %s4 = inlined_call_operand.vmem [shape: f32[14,1], index: 4, kind: input, shape index: {}]
  %s5 = inlined_call_operand.vmem [shape: f32[2,14,256], index: 5, kind: output, shape index: {}]
  %s6 = sld [smem:[#allocation0]]
  $region53: #{input_mlp_forward.1} parent=0
    _
  %s8 = ssub.s32 1, %s6
  %s9 = scalar_select 0, %s8, %s6
  loop: start=0, step=1, limit=4
  $region2: #{input_mlp_forward.1} parent=0 // loop_pre_header
    _
  $region3: #{input_mlp_forward.1} parent=0 // loop_header
    %s11 = sphi 0, %s15
    %p12 = scmp.ge.s32.totalorder %s11, 4
    %s18 = sphi 0, %s30
    %s19 = sphi 0, %s26
    %s20 = sphi 0, %s18
    %s21 = sphi 0, %s19
    %s22 = sphi 0, %s20
    %s23 = sphi 0, %s21
    %s35 = sphi 0, %s37
    %s38 = sphi 0, %s35
    %s39 = sphi 0, %s38
    %s55 = sphi 0, %s39
    %s59 = sphi 0, %s59
    %s61 = sphi 0, %s59
    %s62 = sphi 0, %s61
    %s76 = sphi 0, %s62
    %s80 = sphi 0, %s80
    %s82 = sphi 0, %s80
    %s83 = sphi 0, %s82
    %s97 = sphi 0, %s83
    %s101 = sphi 0, %s101
    %s103 = sphi 0, %s101
    %s104 = sphi 0, %s103
    %s118 = sphi 0, %s104
    %s122 = sphi 0, %s122
    %s124 = sphi 0, %s122
    %s125 = sphi 0, %s124
    %s139 = sphi 0, %s125
    %s147 = sphi 0, %s149
    %s150 = sphi 0, %s147
    %s151 = sphi 0, %s150
    %s167 = sphi 0, %s151
  $region4: #{input_mlp_forward.1} parent=0 // loop_header_branch
    %14 = sbr.rel (%p12) target = $region8
  $region5: #{input_mlp_forward.1} parent=0 // loop_body
    %s16 = ssub.s32 %s11, 1
    %s17 = ssub.s32 %s11, 2
    %s24 = sadd.s32 1, %s19
    %p25 = scmp.ge.s32.totalorder %s24, 1
    %s26 = scalar_select %p25, 0, %s24
    %s27 = sadd.s32 1, %s18
    %s28 = scalar_select %p25, %s27, %s18
    %p29 = scmp.ge.s32.totalorder %s28, 2
    %s30 = scalar_select %p29, 0, %s28
    %s31 = ssub.s32 %s18, %s30
    %s32 = ssub.s32 %s19, %s26
    %s33 = sor.u32 %s31, %s32
    %p34 = scmp.eq.s32.totalorder %s33, 0
    %s36 = sadd.s32 %s35, 1
    %s37 = scalar_select %p34, %s35, %s36
    %p40 = pneg %p34
    %p41 = scmp.eq.s32.totalorder %s11, 1
    %p42 = por %p40, %p41
    %p43 = scmp.ne.s32.totalorder %s35, %s38
    %p44 = scmp.eq.s32.totalorder %s11, 0
    %p45 = por %p43, %p44
    %p46 = scmp.ne.s32.totalorder %s35, %s38
    %p47 = scmp.eq.s32.totalorder %s16, 1
    %p48 = por %p46, %p47
    %p49 = scmp.ne.s32.totalorder %s38, %s39
    %p50 = scmp.eq.s32.totalorder %s16, 0
    %p51 = por %p49, %p50
    %p52 = scmp.ne.s32.totalorder %s38, %s39
    %p53 = scmp.eq.s32.totalorder %s17, 1
    %p54 = por %p52, %p53
    %p56 = scmp.ne.s32.totalorder %s39, %s55
    %p57 = scmp.eq.s32.totalorder %s17, 0
    %p58 = por %p56, %p57
    %s60 = sadd.s32 %s59, 1
    %p63 = scmp.eq.s32.totalorder %s11, 1
    %p64 = scmp.ne.s32.totalorder %s59, %s61
    %p65 = scmp.eq.s32.totalorder %s11, 0
    %p66 = por %p64, %p65
    %p67 = scmp.ne.s32.totalorder %s59, %s61
    %p68 = scmp.eq.s32.totalorder %s16, 1
    %p69 = por %p67, %p68
    %p70 = scmp.ne.s32.totalorder %s61, %s62
    %p71 = scmp.eq.s32.totalorder %s16, 0
    %p72 = por %p70, %p71
    %p73 = scmp.ne.s32.totalorder %s61, %s62
    %p74 = scmp.eq.s32.totalorder %s17, 1
    %p75 = por %p73, %p74
    %p77 = scmp.ne.s32.totalorder %s62, %s76
    %p78 = scmp.eq.s32.totalorder %s17, 0
    %p79 = por %p77, %p78
    %s81 = sadd.s32 %s80, 1
    %p84 = scmp.eq.s32.totalorder %s11, 1
    %p85 = scmp.ne.s32.totalorder %s80, %s82
    %p86 = scmp.eq.s32.totalorder %s11, 0
    %p87 = por %p85, %p86
    %p88 = scmp.ne.s32.totalorder %s80, %s82
    %p89 = scmp.eq.s32.totalorder %s16, 1
    %p90 = por %p88, %p89
    %p91 = scmp.ne.s32.totalorder %s82, %s83
    %p92 = scmp.eq.s32.totalorder %s16, 0
    %p93 = por %p91, %p92
    %p94 = scmp.ne.s32.totalorder %s82, %s83
    %p95 = scmp.eq.s32.totalorder %s17, 1
    %p96 = por %p94, %p95
    %p98 = scmp.ne.s32.totalorder %s83, %s97
    %p99 = scmp.eq.s32.totalorder %s17, 0
    %p100 = por %p98, %p99
    %s102 = sadd.s32 %s101, 1
    %p105 = scmp.eq.s32.totalorder %s11, 1
    %p106 = scmp.ne.s32.totalorder %s101, %s103
    %p107 = scmp.eq.s32.totalorder %s11, 0
    %p108 = por %p106, %p107
    %p109 = scmp.ne.s32.totalorder %s101, %s103
    %p110 = scmp.eq.s32.totalorder %s16, 1
    %p111 = por %p109, %p110
    %p112 = scmp.ne.s32.totalorder %s103, %s104
    %p113 = scmp.eq.s32.totalorder %s16, 0
    %p114 = por %p112, %p113
    %p115 = scmp.ne.s32.totalorder %s103, %s104
    %p116 = scmp.eq.s32.totalorder %s17, 1
    %p117 = por %p115, %p116
    %p119 = scmp.ne.s32.totalorder %s104, %s118
    %p120 = scmp.eq.s32.totalorder %s17, 0
    %p121 = por %p119, %p120
    %s123 = sadd.s32 %s122, 1
    %p126 = scmp.eq.s32.totalorder %s11, 1
    %p127 = scmp.ne.s32.totalorder %s122, %s124
    %p128 = scmp.eq.s32.totalorder %s11, 0
    %p129 = por %p127, %p128
    %p130 = scmp.ne.s32.totalorder %s122, %s124
    %p131 = scmp.eq.s32.totalorder %s16, 1
    %p132 = por %p130, %p131
    %p133 = scmp.ne.s32.totalorder %s124, %s125
    %p134 = scmp.eq.s32.totalorder %s16, 0
    %p135 = por %p133, %p134
    %p136 = scmp.ne.s32.totalorder %s124, %s125
    %p137 = scmp.eq.s32.totalorder %s17, 1
    %p138 = por %p136, %p137
    %p140 = scmp.ne.s32.totalorder %s125, %s139
    %p141 = scmp.eq.s32.totalorder %s17, 0
    %p142 = por %p140, %p141
    %s143 = ssub.s32 %s18, %s30
    %s144 = ssub.s32 %s19, %s26
    %s145 = sor.u32 %s143, %s144
    %p146 = scmp.eq.s32.totalorder %s145, 0
    %s148 = sadd.s32 %s147, 1
    %s149 = scalar_select %p146, %s147, %s148
    %p152 = pneg %p146
    %p153 = scmp.eq.s32.totalorder %s11, 1
    %p154 = por %p152, %p153
    %p155 = scmp.ne.s32.totalorder %s147, %s150
    %p156 = scmp.eq.s32.totalorder %s11, 0
    %p157 = por %p155, %p156
    %p158 = scmp.ne.s32.totalorder %s147, %s150
    %p159 = scmp.eq.s32.totalorder %s16, 1
    %p160 = por %p158, %p159
    %p161 = scmp.ne.s32.totalorder %s150, %s151
    %p162 = scmp.eq.s32.totalorder %s16, 0
    %p163 = por %p161, %p162
    %p164 = scmp.ne.s32.totalorder %s150, %s151
    %p165 = scmp.eq.s32.totalorder %s17, 1
    %p166 = por %p164, %p165
    %p168 = scmp.ne.s32.totalorder %s151, %s167
    %p169 = scmp.eq.s32.totalorder %s17, 0
    %p170 = por %p168, %p169
    %p171 = scmp.le.s32.totalorder 1, %s11
    %p172 = scmp.lt.s32.totalorder %s11, 3
    %p173 = pnand %p171, %p172
    %p174 = pneg %p173
    // Predicated region
    $region9: #{input_mlp_forward.1} parent=5 // pred_check
      _
    $region10: #{input_mlp_forward.1} parent=5 // pred_check_branch
      %176 = sbr.rel (%p173) target = $region12
    $region11: #{input_mlp_forward.1} parent=5 // pred_region
      %s177 = ssub.s32 %s11, 1
      // Predicated region
      $region13: #{input_mlp_forward.1} parent=11 // pred_check
        %p178 = pneg %p72
      $region14: #{input_mlp_forward.1} parent=11 // pred_check_branch
        %180 = sbr.rel (%p178) target = $region16
      $region15: #{input_mlp_forward.1} parent=11 // pred_region
        _
      $region16: #{input_mlp_forward.1} parent=11 // pred_fallthru
        _
      // Predicated region
      $region17: #{input_mlp_forward.1} parent=11 // pred_check
        %p181 = pneg %p93
      $region18: #{input_mlp_forward.1} parent=11 // pred_check_branch
        %183 = sbr.rel (%p181) target = $region20
      $region19: #{input_mlp_forward.1} parent=11 // pred_region
        _
      $region20: #{input_mlp_forward.1} parent=11 // pred_fallthru
        _
      // Predicated region
      $region21: #{input_mlp_forward.1} parent=11 // pred_check
        %p184 = pneg %p114
      $region22: #{input_mlp_forward.1} parent=11 // pred_check_branch
        %186 = sbr.rel (%p184) target = $region24
      $region23: #{input_mlp_forward.1} parent=11 // pred_region
        _
      $region24: #{input_mlp_forward.1} parent=11 // pred_fallthru
        _
      // Predicated region
      $region25: #{input_mlp_forward.1} parent=11 // pred_check
        %p187 = pneg %p135
      $region26: #{input_mlp_forward.1} parent=11 // pred_check_branch
        %189 = sbr.rel (%p187) target = $region28
      $region27: #{input_mlp_forward.1} parent=11 // pred_region
        _
      $region28: #{input_mlp_forward.1} parent=11 // pred_fallthru
        _
    $region12: #{input_mlp_forward.1} parent=5 // pred_fallthru
      _
    %p190 = scmp.lt.s32.totalorder %s11, 2
    // Predicated region
    $region29: #{input_mlp_forward.1} parent=5 // pred_check
      %p191 = pneg %p190
    $region30: #{input_mlp_forward.1} parent=5 // pred_check_branch
      %193 = sbr.rel (%p191) target = $region32
    $region31: #{input_mlp_forward.1} parent=5 // pred_region
      // Predicated region
      $region33: #{input_mlp_forward.1} parent=31 // pred_check
        %p194 = pneg %p45
      $region34: #{input_mlp_forward.1} parent=31 // pred_check_branch
        %196 = sbr.rel (%p194) target = $region36
      $region35: #{input_mlp_forward.1} parent=31 // pred_region
        %s197 = smul.u32 2, %s19
        %p198 = scmp.lt.s32.totalorder %s18, 1
        %s199 = scalar_select %p198, %s18, 1
        %p200 = scmp.lt.s32.totalorder %s197, 1
        %s201 = scalar_select %p200, %s197, 1
        %s202 = smul.addr %s199, 4
        %s203 = sadd.s32 %s201, %s202
        %s204 = smul.addr %s203, 8
        %s205 = scalar_lea.vmem %s0, %s204
        %s206 = smul.u32 2, %s19
      $region36: #{input_mlp_forward.1} parent=31 // pred_fallthru
        _
    $region32: #{input_mlp_forward.1} parent=5 // pred_fallthru
      _
    %p207 = scmp.le.s32.totalorder 1, %s11
    %p208 = scmp.lt.s32.totalorder %s11, 3
    %p209 = pnand %p207, %p208
    %p210 = pneg %p209
    // Predicated region
    $region37: #{input_mlp_forward.1} parent=5 // pred_check
      _
    $region38: #{input_mlp_forward.1} parent=5 // pred_check_branch
      %212 = sbr.rel (%p209) target = $region40
    $region39: #{input_mlp_forward.1} parent=5 // pred_region
      %s213 = ssub.s32 %s11, 1
      %s214 = smul.u32 2, %s21
      %p215 = scmp.lt.s32.totalorder %s20, 1
      %s216 = scalar_select %p215, %s20, 1
      %p217 = scmp.lt.s32.totalorder %s214, 1
      %s218 = scalar_select %p217, %s214, 1
      %s219 = smul.addr %s216, 4
      %s220 = sadd.s32 %s218, %s219
      %s221 = smul.addr %s220, 8
      %s222 = scalar_lea.vmem %s0, %s221
      %p223 = pneg %p51
      %p224 = pneg %p48
      %p225 = pneg %p72
      %p226 = pneg %p69
      %p227 = pneg %p93
      %p228 = pneg %p90
      %p229 = pneg %p114
      %p230 = pneg %p111
      %p231 = pneg %p135
      %p232 = pneg %p132
      %p233 = pneg %p163
      %p234 = pneg %p160
      %s235 = smul.u32 2, %s21
      %p236 = scmp.lt.s32.totalorder %s20, 1
      %s237 = scalar_select %p236, %s20, 1
      %p238 = scmp.lt.s32.totalorder %s235, 1
      %s239 = scalar_select %p238, %s235, 1
      %s240 = smul.addr %s237, 4
      %s241 = sadd.s32 %s239, %s240
      %s242 = smul.addr %s241, 8
      %s243 = scalar_lea.vmem %s5, %s242
      %s244 = smul.u32 2, %s21
      %p245 = scmp.lt.s32.totalorder %s20, 1
      %s246 = scalar_select %p245, %s20, 1
      %p247 = scmp.lt.s32.totalorder %s244, 1
      %s248 = scalar_select %p247, %s244, 1
      %s249 = smul.addr %s246, 4
      %s250 = sadd.s32 %s248, %s249
      %s251 = smul.addr %s250, 8
      %s252 = scalar_lea.vmem %s0, %s251
      %s253 = smul.u32 2, %s21
      %s254 = smul.u32 2, %s21
      %p255 = scmp.lt.s32.totalorder %s20, 1
      %s256 = scalar_select %p255, %s20, 1
      %p257 = scmp.lt.s32.totalorder %s254, 1
      %s258 = scalar_select %p257, %s254, 1
      %s259 = smul.addr %s256, 4
      %s260 = sadd.s32 %s258, %s259
      %s261 = smul.addr %s260, 8
      %s262 = scalar_lea.vmem %s5, %s261
      %s263 = smul.u32 2, %s21
      %v264 = vld [vmem:[%s252] sm:$0xff]
      %v265 = vld [vmem:[%s252 + $0x8] sm:$0xff]
      %v266 = vld [vmem:[%s252 + $0x10] sm:$0xff]
      %v267 = vld [vmem:[%s252 + $0x18] sm:$0xff]
      %v268 = vld [vmem:[%s1] sm:$0xff]
      %v269 = vld [vmem:[%s1 + $0x8] sm:$0xff]
      %v270 = vld [vmem:[%s1 + $0x10] sm:$0xff]
      %v271 = vld [vmem:[%s1 + $0x18] sm:$0xff]
      %v272 = vld [vmem:[%s2] sm:$0xff]
      %v273 = vld [vmem:[%s2 + $0x8] sm:$0xff]
      %v274 = vld [vmem:[%s2 + $0x10] sm:$0xff]
      %v275 = vld [vmem:[%s2 + $0x18] sm:$0xff]
      %277 = vset.pattern.permute.xlu0 0
      %278 = vperm.xlu0 %277, %v272
      %v279 = vpop.permute.xlu0 %278
      %282 = vset.pattern.permute.xlu0 0
      %283 = vperm.xlu0 %282, %v273
      %v284 = vpop.permute.xlu0 %283
      %287 = vset.pattern.permute.xlu0 0
      %288 = vperm.xlu0 %287, %v274
      %v289 = vpop.permute.xlu0 %288
      %292 = vset.pattern.permute.xlu0 0
      %293 = vperm.xlu0 %292, %v275
      %v294 = vpop.permute.xlu0 %293
      %vm296 = vcmask 130048
      %v298 = vsel %vm296, %v268, 0
      %v301 = vsel %vm296, %v269, 0
      %v304 = vsel %vm296, %v270, 0
      %v307 = vsel %vm296, %v271, 0
      %309 = vmatprep.subr.mxu0 %v265
      %310 = vmatpush1.msra.mxu0 %v264
      %311 = vmatprep.subr.mxu0 %v267
      %312 = vmatpush1.msra.mxu0 %v266
      %313 = vmatprep.subr.mxu0 0.0
      %314 = vmatpush1.msra.mxu0 0.0
      %315 = vmatprep.subr.mxu0 0.0
      %316 = vmatpush1.msra.mxu0 0.0
      %317 = vmatprep.subr.mxu0 0.0
      %318 = vmatpush1.msra.mxu0 0.0
      %319 = vmatprep.subr.mxu0 0.0
      %320 = vmatpush1.msra.mxu0 0.0
      %321 = vmatprep.subr.mxu0 0.0
      %322 = vmatpush1.msra.mxu0 0.0
      %323 = vmatprep.subr.mxu0 0.0
      %324 = vmatpush1.msra.mxu0 0.0
      %325 = vmatprep.subr.mxu0 0.0
      %326 = vmatpush1.msra.mxu0 0.0
      %327 = vmatprep.subr.mxu0 0.0
      %328 = vmatpush1.msra.mxu0 0.0
      %329 = vmatprep.subr.mxu0 0.0
      %330 = vmatpush1.msra.mxu0 0.0
      %331 = vmatprep.subr.mxu0 0.0
      %332 = vmatpush1.msra.mxu0 0.0
      %333 = vmatprep.subr.mxu0 0.0
      %334 = vmatpush1.msra.mxu0 0.0
      %335 = vmatprep.subr.mxu0 0.0
      %336 = vmatpush1.msra.mxu0 0.0
      %337 = vmatprep.subr.mxu0 0.0
      %338 = vmatpush1.msra.mxu0 0.0
      %339 = vmatprep.subr.mxu0 0.0
      %340 = vmatpush1.msra.mxu0 0.0
      %341 = vmatprep.subr.mxu0 0.0
      %342 = vmatpush1.msra.mxu0 0.0
      %343 = vmatprep.subr.mxu0 0.0
      %344 = vmatpush1.msra.mxu0 0.0
      %345 = vmatprep.subr.mxu0 0.0
      %346 = vmatpush1.msra.mxu0 0.0
      %347 = vmatprep.subr.mxu0 0.0
      %348 = vmatpush1.msra.mxu0 0.0
      %349 = vmatprep.subr.mxu0 0.0
      %350 = vmatpush1.msra.mxu0 0.0
      %351 = vmatprep.subr.mxu0 0.0
      %352 = vmatpush1.msra.mxu0 0.0
      %353 = vmatprep.subr.mxu0 0.0
      %354 = vmatpush1.msra.mxu0 0.0
      %355 = vmatprep.subr.mxu0 0.0
      %356 = vmatpush1.msra.mxu0 0.0
      %357 = vmatprep.subr.mxu0 0.0
      %358 = vmatpush1.msra.mxu0 0.0
      %359 = vmatprep.subr.mxu0 0.0
      %360 = vmatpush1.msra.mxu0 0.0
      %361 = vmatprep.subr.mxu0 0.0
      %362 = vmatpush1.msra.mxu0 0.0
      %363 = vmatprep.subr.mxu0 0.0
      %364 = vmatpush1.msra.mxu0 0.0
      %365 = vmatprep.subr.mxu0 0.0
      %366 = vmatpush1.msra.mxu0 0.0
      %367 = vmatprep.subr.mxu0 0.0
      %368 = vmatpush1.msra.mxu0 0.0
      %369 = vmatprep.subr.mxu0 0.0
      %370 = vmatpush1.msra.mxu0 0.0
      %371 = vmatprep.subr.mxu0 0.0
      %372 = vmatpush1.msra.mxu0 0.0
      %373 = vmatprep.mubr.f32.mxu0 0.0
      %374 = vmatmul.mubr.f32.gmra.mrb[0].mxu0 %v298
      %v375 = vpop.f32.mrb[0].mxu0
      %v376 = vadd.f32 %v279, %v375
      %v377 = vpop.f32.mrb[0].mxu0
      %v378 = vadd.f32 %v279, %v377
      %379 = vmatprep.mubr.f32.mxu0 0.0
      %380 = vmatmul.mubr.f32.gmra.mrb[0].mxu0 %v301
      %v381 = vpop.f32.mrb[0].mxu0
      %v382 = vadd.f32 %v284, %v381
      %v383 = vpop.f32.mrb[0].mxu0
      %v384 = vadd.f32 %v284, %v383
      %385 = vmatprep.mubr.f32.mxu0 0.0
      %386 = vmatmul.mubr.f32.gmra.mrb[0].mxu0 %v304
      %v387 = vpop.f32.mrb[0].mxu0
      %v388 = vadd.f32 %v289, %v387
      %v389 = vpop.f32.mrb[0].mxu0
      %v390 = vadd.f32 %v289, %v389
      %391 = vmatprep.mubr.f32.mxu0 0.0
      %392 = vmatmul.mubr.f32.gmra.mrb[0].mxu0 %v307
      %v393 = vpop.f32.mrb[0].mxu0
      %v394 = vadd.f32 %v294, %v393
      %v395 = vpop.f32.mrb[0].mxu0
      %v396 = vadd.f32 %v294, %v395
      %397 = vdwg.mxu0
      %v398 = vmax.f32 %v376, 0.0
      %v399 = vmax.f32 %v378, 0.0
      %v400 = vmax.f32 %v382, 0.0
      %v401 = vmax.f32 %v384, 0.0
      %v402 = vmax.f32 %v388, 0.0
      %v403 = vmax.f32 %v390, 0.0
      %v404 = vmax.f32 %v394, 0.0
      %v405 = vmax.f32 %v396, 0.0
      %v406 = vld [vmem:[%s3] sm:$0xff]
      %v407 = vld [vmem:[%s3 + $0x8] sm:$0x3f]
      %v408 = vld [vmem:[%s4] sm:$0xff]
      %v409 = vld [vmem:[%s4 + $0x8] sm:$0x3f]
      %411 = vset.pattern.permute.xlu0 0
      %412 = vperm.xlu0 %411, %v408
      %v413 = vpop.permute.xlu0 %412
      %416 = vset.pattern.permute.xlu0 0
      %417 = vperm.xlu0 %416, %v409
      %v418 = vpop.permute.xlu0 %417
      %vm420 = vcmask 261120
      %v422 = vsel %vm420, %v406, 0
      %v425 = vsel %vm420, %v407, 0
      %427 = vmatprep.subr.mxu0 %v399
      %428 = vmatpush1.msra.mxu0 %v398
      %429 = vmatprep.subr.mxu0 %v401
      %430 = vmatpush1.msra.mxu0 %v400
      %431 = vmatprep.subr.mxu0 %v403
      %432 = vmatpush1.msra.mxu0 %v402
      %433 = vmatprep.subr.mxu0 %v405
      %434 = vmatpush1.msra.mxu0 %v404
      %435 = vmatprep.subr.mxu0 0.0
      %436 = vmatpush1.msra.mxu0 0.0
      %437 = vmatprep.subr.mxu0 0.0
      %438 = vmatpush1.msra.mxu0 0.0
      %439 = vmatprep.subr.mxu0 0.0
      %440 = vmatpush1.msra.mxu0 0.0
      %441 = vmatprep.subr.mxu0 0.0
      %442 = vmatpush1.msra.mxu0 0.0
      %443 = vmatprep.subr.mxu0 0.0
      %444 = vmatpush1.msra.mxu0 0.0
      %445 = vmatprep.subr.mxu0 0.0
      %446 = vmatpush1.msra.mxu0 0.0
      %447 = vmatprep.subr.mxu0 0.0
      %448 = vmatpush1.msra.mxu0 0.0
      %449 = vmatprep.subr.mxu0 0.0
      %450 = vmatpush1.msra.mxu0 0.0
      %451 = vmatprep.subr.mxu0 0.0
      %452 = vmatpush1.msra.mxu0 0.0
      %453 = vmatprep.subr.mxu0 0.0
      %454 = vmatpush1.msra.mxu0 0.0
      %455 = vmatprep.subr.mxu0 0.0
      %456 = vmatpush1.msra.mxu0 0.0
      %457 = vmatprep.subr.mxu0 0.0
      %458 = vmatpush1.msra.mxu0 0.0
      %459 = vmatprep.subr.mxu0 0.0
      %460 = vmatpush1.msra.mxu0 0.0
      %461 = vmatprep.subr.mxu0 0.0
      %462 = vmatpush1.msra.mxu0 0.0
      %463 = vmatprep.subr.mxu0 0.0
      %464 = vmatpush1.msra.mxu0 0.0
      %465 = vmatprep.subr.mxu0 0.0
      %466 = vmatpush1.msra.mxu0 0.0
      %467 = vmatprep.subr.mxu0 0.0
      %468 = vmatpush1.msra.mxu0 0.0
      %469 = vmatprep.subr.mxu0 0.0
      %470 = vmatpush1.msra.mxu0 0.0
      %471 = vmatprep.subr.mxu0 0.0
      %472 = vmatpush1.msra.mxu0 0.0
      %473 = vmatprep.subr.mxu0 0.0
      %474 = vmatpush1.msra.mxu0 0.0
      %475 = vmatprep.subr.mxu0 0.0
      %476 = vmatpush1.msra.mxu0 0.0
      %477 = vmatprep.subr.mxu0 0.0
      %478 = vmatpush1.msra.mxu0 0.0
      %479 = vmatprep.subr.mxu0 0.0
      %480 = vmatpush1.msra.mxu0 0.0
      %481 = vmatprep.subr.mxu0 0.0
      %482 = vmatpush1.msra.mxu0 0.0
      %483 = vmatprep.subr.mxu0 0.0
      %484 = vmatpush1.msra.mxu0 0.0
      %485 = vmatprep.subr.mxu0 0.0
      %486 = vmatpush1.msra.mxu0 0.0
      %487 = vmatprep.subr.mxu0 0.0
      %488 = vmatpush1.msra.mxu0 0.0
      %489 = vmatprep.subr.mxu0 0.0
      %490 = vmatpush1.msra.mxu0 0.0
      %491 = vmatprep.mubr.f32.mxu0 0.0
      %492 = vmatmul.mubr.f32.gmra.mrb[0].mxu0 %v422
      %v493 = vpop.f32.mrb[0].mxu0
      %v494 = vadd.f32 %v413, %v493
      %v495 = vpop.f32.mrb[0].mxu0
      %v496 = vadd.f32 %v413, %v495
      %497 = vmatprep.mubr.f32.mxu0 0.0
      %498 = vmatmul.mubr.f32.gmra.mrb[0].mxu0 %v425
      %v499 = vpop.f32.mrb[0].mxu0
      %v500 = vadd.f32 %v418, %v499
      %v501 = vpop.f32.mrb[0].mxu0
      %v502 = vadd.f32 %v418, %v501
      %503 = vdwg.mxu0
      %504 = vst [vmem:[%s262] sm:$0xff] %v494
      %505 = vst [vmem:[%s262 + $0x8] sm:$0xff] %v496
      %506 = vst [vmem:[%s262 + $0x10] sm:$0x3f] %v500
      %507 = vst [vmem:[%s262 + $0x18] sm:$0x3f] %v502
      %s508 = smul.u32 2, %s21
      %p509 = scmp.lt.s32.totalorder %s20, 1
      %s510 = scalar_select %p509, %s20, 1
      %p511 = scmp.lt.s32.totalorder %s508, 1
      %s512 = scalar_select %p511, %s508, 1
      %s513 = smul.addr %s510, 4
      %s514 = sadd.s32 %s512, %s513
      %s515 = smul.addr %s514, 8
      %s516 = scalar_lea.vmem %s5, %s515
      // Predicated region
      $region41: #{input_mlp_forward.1} parent=39 // pred_check
        %p517 = pneg %p160
      $region42: #{input_mlp_forward.1} parent=39 // pred_check_branch
        %519 = sbr.rel (%p517) target = $region44
      $region43: #{input_mlp_forward.1} parent=39 // pred_region
        %s520 = smul.u32 2, %s21
      $region44: #{input_mlp_forward.1} parent=39 // pred_fallthru
        _
    $region40: #{input_mlp_forward.1} parent=5 // pred_fallthru
      _
    %p521 = scmp.le.s32.totalorder 2, %s11
    // Predicated region
    $region45: #{input_mlp_forward.1} parent=5 // pred_check
      %p522 = pneg %p521
    $region46: #{input_mlp_forward.1} parent=5 // pred_check_branch
      %524 = sbr.rel (%p522) target = $region48
    $region47: #{input_mlp_forward.1} parent=5 // pred_region
      %s525 = ssub.s32 %s11, 2
      // Predicated region
      $region49: #{input_mlp_forward.1} parent=47 // pred_check
        %p526 = pneg %p166
      $region50: #{input_mlp_forward.1} parent=47 // pred_check_branch
        %528 = sbr.rel (%p526) target = $region52
      $region51: #{input_mlp_forward.1} parent=47 // pred_region
        %s529 = smul.u32 2, %s23
        %p530 = scmp.lt.s32.totalorder %s22, 1
        %s531 = scalar_select %p530, %s22, 1
        %p532 = scmp.lt.s32.totalorder %s529, 1
        %s533 = scalar_select %p532, %s529, 1
        %s534 = smul.addr %s531, 4
        %s535 = sadd.s32 %s533, %s534
        %s536 = smul.addr %s535, 8
        %s537 = scalar_lea.vmem %s5, %s536
      $region52: #{input_mlp_forward.1} parent=47 // pred_fallthru
        _
    $region48: #{input_mlp_forward.1} parent=5 // pred_fallthru
      _
  $region6: #{input_mlp_forward.1} parent=0 // loop_footer
    %s15 = sadd.s32 1, %s11
  $region7: #{input_mlp_forward.1} parent=0 // loop_footer_branch
    %10 = sbr.rel target = $region3
  $region8: #{input_mlp_forward.1} parent=0 // loop_exit
    _

</llo_original>
